<compile_context>
chip_gen: v6e
topology: v6e:2x2x1
jax: 0.10.0
libtpu: 0.0.40
codegen_flags: <defaults>
</compile_context>

<pallas_src>
import jax
import jax.numpy as jnp
import numpy as np
from jax.experimental import pallas as pl
from jax.experimental.pallas import tpu as pltpu

K = 17        # conv kernel size
PAD = 8       # conv padding ("same" for stride=1)
EPS = 1e-5    # BatchNorm eps


def _round_up(x, m):
    return ((x + m - 1) // m) * m


def _rotate(a, s):
    """Circular left-rotate along lanes: out[:, j] = a[:, (j + s) % W]; s static, |s| <= PAD."""
    if s == 0:
        return a
    return jnp.concatenate([a[:, s:], a[:, :s]], axis=1)


def _im2col(a):
    """(C, W) activation -> (K*C, W) patch; row k*C + c holds a[c, j + k - PAD].

    Wrap-around values from the rotation only land in pad columns of the first/last sample
    slot (each slot has >= PAD zeroed pad columns on both sides), which are discarded.
    """
    return jnp.concatenate([_rotate(a, k - PAD) for k in range(K)], axis=0)


def basic_block_kernel(x_ref, m_ref, s1_ref, b1_ref, w1_ref, s2_ref, b2_ref,
                       w2_ref, o_ref):
    x = x_ref[...]                    # (C, nb*Lp) f32
    mask = m_ref[...]                 # (1, nb*Lp) f32: 1.0 = real column, 0.0 = pad column
    cdt = w1_ref.dtype                # matmul operand dtype (bf16 by default)

    # bn1 (folded scale/shift) + ReLU; dropout = identity (eval).  Pad columns are forced to
    # zero so the im2col shifts reproduce the conv's zero padding.  Cast BEFORE im2col.
    a1 = (jnp.maximum(x * s1_ref[...] + b1_ref[...], 0.0) * mask).astype(cdt)

    # conv1: single fused im2col matmul over all nb samples (lanes = nb*Lp), f32 accumulation.
    y1 = jnp.dot(w1_ref[...], _im2col(a1), preferred_element_type=jnp.float32)

    # bn2 + ReLU; dropout = identity (eval); re-zero pad columns before the second im2col.
    a2 = (jnp.maximum(y1 * s2_ref[...] + b2_ref[...], 0.0) * mask).astype(cdt)

    # conv2.
    y2 = jnp.dot(w2_ref[...], _im2col(a2), preferred_element_type=jnp.float32)

    # Residual add (downsample=None => identity = x).  Pad columns hold garbage and are
    # sliced away by the wrapper.  Store is a full-lane (multiple-of-128 wide) vst.
    o_ref[...] = (y2 + x).astype(o_ref.dtype)


def _vmem_limit_bytes():
    """VMEM limit with headroom: ~48 MiB on v7x (64 MiB physical), ~96 MiB on v5e/v6e (128 MiB)."""
    cap = None
    try:
        cap = getattr(pltpu.get_tpu_info(), "vmem_capacity_bytes", None)
    except Exception:
        cap = None
    if not cap:
        cap = 64 * 1024 * 1024        # conservative fallback: smallest per-core VMEM (v7x)
    return int(min(cap * 3 // 4, 96 * 1024 * 1024))


def _pick_batch_block(n, c, lp, conv_bytes, budget_bytes, fixed_bytes):
    """Samples folded per grid step, sized against the real per-step VMEM footprint."""
    per_sample = c * lp * (
        4 * 2 * 2                 # x block + out block, f32, double-buffered
        + 2 * conv_bytes          # a1 / a2 activations (matmul dtype)
        + 2 * K * conv_bytes      # two im2col patches (matmul dtype)
        + 2 * 4                   # y1 / y2 f32 conv outputs
    )
    avail = budget_bytes - fixed_bytes
    if avail < per_sample:
        # TODO(synk): L-tiled grid with a +/-PAD halo for very long sequences.
        raise NotImplementedError(
            "BasicBlock Pallas kernel: a single sample does not fit the VMEM budget "
            f"(need ~{per_sample} B, have {avail} B); L-tiled halo path not implemented.")
    nb = int(min(n, avail // per_sample))
    # Keep at least 2 grid steps when possible (pipeline overlap; dual-TC sharding on v7x).
    while nb > 1 and n // nb < 2:
        nb -= 1
    # The grid must tile the batch exactly.
    while n % nb:
        nb -= 1
    return nb


def basic_block_forward(x_ncl, params, conv_dtype=jnp.bfloat16, training=False):
    """x_ncl: (N, C, L) float32, same layout as the PyTorch module.  Returns (N, C, L)."""
    if training:
        raise NotImplementedError(
            "Only eval-mode forward is implemented (BN running stats, dropout = identity).")
    N, cin, L = x_ncl.shape
    w1 = params["w1"]                      # (planes, cin, K)
    w2 = params["w2"]                      # (planes, planes, K)
    planes = w1.shape[0]
    assert cin == planes, "residual add requires inplanes == planes (downsample=None)"

    # Fold BatchNorm (inference) into per-channel scale/shift.
    scale1 = params["gamma1"] * jax.lax.rsqrt(params["var1"] + EPS)
    shift1 = params["beta1"] - params["mean1"] * scale1
    scale2 = params["gamma2"] * jax.lax.rsqrt(params["var2"] + EPS)
    shift2 = params["beta2"] - params["mean2"] * scale2

    # (Cout, Cin, K) -> (Cout, K, Cin) -> (Cout, K*Cin): matches patch row order k*Cin + ci.
    w1_flat = jnp.transpose(w1, (0, 2, 1)).reshape(planes, K * cin).astype(conv_dtype)
    w2_flat = jnp.transpose(w2, (0, 2, 1)).reshape(planes, K * planes).astype(conv_dtype)

    # Lane-aligned per-sample slot: PAD zeros on the left, >= PAD zeros on the right,
    # slot width a multiple of 128 so every block load/store is lane-dense.
    lp = _round_up(L + 2 * PAD, 128)
    x_pad = jnp.pad(jnp.transpose(x_ncl, (1, 0, 2)),
                    ((0, 0), (0, 0), (PAD, lp - L - PAD)))          # (C, N, Lp)
    x2d = x_pad.reshape(cin, N * lp)

    pos = jnp.arange(lp, dtype=jnp.int32)
    valid = ((pos >= PAD) & (pos < PAD + L)).astype(x_ncl.dtype)    # (Lp,)
    mask2d = jnp.tile(valid, N).reshape(1, N * lp)

    conv_bytes = jnp.dtype(conv_dtype).itemsize
    fixed_bytes = 2 * (w1_flat.size + w2_flat.size) * conv_bytes \
        + 2 * 4 * (2 * cin + 2 * planes)                            # 2x-buffered weights + scales
    vmem_limit = _vmem_limit_bytes()
    nb = _pick_batch_block(N, cin, lp, conv_bytes, vmem_limit, fixed_bytes)
    wcols = nb * lp
    grid = (N // nb,)

    flops = 2 * (2 * N * lp * K * cin * planes)                     # two convs, 2 flops per MAC
    bytes_accessed = ((x2d.size + planes * N * lp + mask2d.size) * 4
                      + (w1_flat.size + w2_flat.size) * conv_bytes
                      + 4 * (cin + planes) * 4)

    out2d = pl.pallas_call(
        basic_block_kernel,
        out_shape=jax.ShapeDtypeStruct((planes, N * lp), x_ncl.dtype),
        grid=grid,
        in_specs=[
            pl.BlockSpec((cin, wcols), lambda i: (0, i)),           # x (padded, channels-major)
            pl.BlockSpec((1, wcols), lambda i: (0, i)),             # pad-column mask
            pl.BlockSpec((cin, 1), lambda i: (0, 0)),               # bn1 scale
            pl.BlockSpec((cin, 1), lambda i: (0, 0)),               # bn1 shift
            pl.BlockSpec((planes, K * cin), lambda i: (0, 0)),      # w1 (im2col-flattened)
            pl.BlockSpec((planes, 1), lambda i: (0, 0)),            # bn2 scale
            pl.BlockSpec((planes, 1), lambda i: (0, 0)),            # bn2 shift
            pl.BlockSpec((planes, K * planes), lambda i: (0, 0)),   # w2 (im2col-flattened)
        ],
        out_specs=pl.BlockSpec((planes, wcols), lambda i: (0, i)),
        compiler_params=pltpu.CompilerParams(
            dimension_semantics=("parallel",),
            vmem_limit_bytes=vmem_limit,
        ),
        cost_estimate=pl.CostEstimate(flops=int(flops), transcendentals=0,
                                      bytes_accessed=int(bytes_accessed)),
    )(
        x2d, mask2d,
        scale1.reshape(cin, 1), shift1.reshape(cin, 1), w1_flat,
        scale2.reshape(planes, 1), shift2.reshape(planes, 1), w2_flat,
    )

    out = out2d.reshape(planes, N, lp)[:, :, PAD:PAD + L]           # drop pad columns
    return jnp.transpose(out, (1, 0, 2))                            # back to (N, C, L)


def reference_forward(x_ncl, params):
    """Pure-JAX reference in NCL (eval mode) for the correctness check."""
    def bn(x, g, b, m, v):
        return (x - m[None, :, None]) * (g * jax.lax.rsqrt(v + EPS))[None, :, None] \
               + b[None, :, None]

    def conv(x, w):  # x: NCL, w: (O, I, K)
        return jax.lax.conv_general_dilated(
            x, w, window_strides=(1,), padding=[(PAD, PAD)],
            dimension_numbers=("NCH", "OIH", "NCH"))

    out = jnp.maximum(bn(x_ncl, params["gamma1"], params["beta1"],
                         params["mean1"], params["var1"]), 0.0)
    out = conv(out, params["w1"])
    out = jnp.maximum(bn(out, params["gamma2"], params["beta2"],
                         params["mean2"], params["var2"]), 0.0)
    out = conv(out, params["w2"])
    return out + x_ncl


if __name__ == "__main__":
    def make_params(key, cin, planes):
        ks = jax.random.split(key, 10)
        return {
            "w1": 0.1 * jax.random.normal(ks[0], (planes, cin, K), jnp.float32),
            "w2": 0.1 * jax.random.normal(ks[1], (planes, planes, K), jnp.float32),
            "gamma1": 1.0 + 0.1 * jax.random.normal(ks[2], (cin,), jnp.float32),
            "beta1": 0.1 * jax.random.normal(ks[3], (cin,), jnp.float32),
            "mean1": 0.1 * jax.random.normal(ks[4], (cin,), jnp.float32),
            "var1": 1.0 + 0.5 * jax.random.uniform(ks[5], (cin,), jnp.float32),
            "gamma2": 1.0 + 0.1 * jax.random.normal(ks[6], (planes,), jnp.float32),
            "beta2": 0.1 * jax.random.normal(ks[7], (planes,), jnp.float32),
            "mean2": 0.1 * jax.random.normal(ks[8], (planes,), jnp.float32),
            "var2": 1.0 + 0.5 * jax.random.uniform(ks[9], (planes,), jnp.float32),
        }

    key = jax.random.PRNGKey(0)
    # Case 1: spec-sized small shapes (batch=2, inplanes=planes=8, L=32) -> nb=1, grid=(2,).
    # Case 2: larger batch so several samples fuse into one (K*Cin, nb*Lp) matmul (nb=4, grid=(2,)).
    for (n, c, l) in [(2, 8, 32), (8, 8, 32)]:
        kp, kx, key = jax.random.split(key, 3)
        params = make_params(kp, c, c)
        x = jax.random.normal(kx, (n, c, l), jnp.float32)

        out = jax.block_until_ready(basic_block_forward(x, params))
        ref = jax.block_until_ready(reference_forward(x, params))

        assert out.shape == (n, c, l)
        # bf16 matmul operands (f32 accumulation) => O(1e-3..1e-2) absolute error at these scales.
        np.testing.assert_allclose(np.asarray(out), np.asarray(ref), rtol=2e-2, atol=2e-2)

    print("KERNEL_OK")
</pallas_src>

<mosaic_0001>
module attributes {stable_mosaic.version = 11 : i64} {
  func.func @basic_block_kernel(%arg0: i32, %arg1: memref<8x128xf32, #tpu.memory_space<vmem>>, %arg2: memref<1x128xf32, #tpu.memory_space<vmem>>, %arg3: memref<8x1xf32, #tpu.memory_space<vmem>>, %arg4: memref<8x1xf32, #tpu.memory_space<vmem>>, %arg5: memref<8x136xbf16, #tpu.memory_space<vmem>>, %arg6: memref<8x1xf32, #tpu.memory_space<vmem>>, %arg7: memref<8x1xf32, #tpu.memory_space<vmem>>, %arg8: memref<8x136xbf16, #tpu.memory_space<vmem>>, %arg9: memref<8x128xf32, #tpu.memory_space<vmem>>) attributes {dimension_semantics = [#tpu.dimension_semantics<parallel>], iteration_bounds = array<i64: 2>, scalar_prefetch = 0 : i64, scratch_operands = 0 : i64, tpu.core_type = #tpu.core_type<tc>, window_params = [{transform_indices = @transform_0, window_bounds = array<i64: 8, 128>}, {transform_indices = @transform_1, window_bounds = array<i64: 1, 128>}, {pipeline_mode = #tpu.pipeline_mode<synchronous>, transform_indices = @transform_2, window_bounds = array<i64: 8, 1>}, {pipeline_mode = #tpu.pipeline_mode<synchronous>, transform_indices = @transform_3, window_bounds = array<i64: 8, 1>}, {pipeline_mode = #tpu.pipeline_mode<synchronous>, transform_indices = @transform_4, window_bounds = array<i64: 8, 136>}, {pipeline_mode = #tpu.pipeline_mode<synchronous>, transform_indices = @transform_5, window_bounds = array<i64: 8, 1>}, {pipeline_mode = #tpu.pipeline_mode<synchronous>, transform_indices = @transform_6, window_bounds = array<i64: 8, 1>}, {pipeline_mode = #tpu.pipeline_mode<synchronous>, transform_indices = @transform_7, window_bounds = array<i64: 8, 136>}, {transform_indices = @transform_8, window_bounds = array<i64: 8, 128>}]} {
    %c0 = arith.constant 0 : index
    %c0_0 = arith.constant 0 : index
    %0 = vector.load %arg1[%c0, %c0_0] : memref<8x128xf32, #tpu.memory_space<vmem>>, vector<8x128xf32>
    %c0_1 = arith.constant 0 : index
    %c0_2 = arith.constant 0 : index
    %1 = vector.load %arg2[%c0_1, %c0_2] : memref<1x128xf32, #tpu.memory_space<vmem>>, vector<1x128xf32>
    %c0_3 = arith.constant 0 : index
    %c0_4 = arith.constant 0 : index
    %2 = vector.load %arg3[%c0_3, %c0_4] : memref<8x1xf32, #tpu.memory_space<vmem>>, vector<8x1xf32>
    %3 = vector.broadcast %2 : vector<8x1xf32> to vector<8x128xf32>
    %4 = arith.mulf %0, %3 : vector<8x128xf32>
    %c0_5 = arith.constant 0 : index
    %c0_6 = arith.constant 0 : index
    %5 = vector.load %arg4[%c0_5, %c0_6] : memref<8x1xf32, #tpu.memory_space<vmem>>, vector<8x1xf32>
    %6 = vector.broadcast %5 : vector<8x1xf32> to vector<8x128xf32>
    %7 = arith.addf %4, %6 : vector<8x128xf32>
    %cst = arith.constant 0.000000e+00 : f32
    %8 = vector.broadcast %cst : f32 to vector<8x128xf32>
    %9 = arith.maximumf %7, %8 : vector<8x128xf32>
    %10 = vector.broadcast %1 : vector<1x128xf32> to vector<8x128xf32>
    %11 = arith.mulf %9, %10 : vector<8x128xf32>
    %12 = arith.truncf %11 : vector<8x128xf32> to vector<8x128xbf16>
    %c0_7 = arith.constant 0 : index
    %c0_8 = arith.constant 0 : index
    %13 = vector.load %arg5[%c0_7, %c0_8] : memref<8x136xbf16, #tpu.memory_space<vmem>>, vector<8x136xbf16>
    %14 = vector.extract_strided_slice %12 {offsets = [0, 120], sizes = [8, 8], strides = [1, 1]} : vector<8x128xbf16> to vector<8x8xbf16>
    %15 = vector.extract_strided_slice %12 {offsets = [0, 0], sizes = [8, 120], strides = [1, 1]} : vector<8x128xbf16> to vector<8x120xbf16>
    %16 = tpu.concatenate %14, %15 in 1 : vector<8x8xbf16>, vector<8x120xbf16> -> vector<8x128xbf16>
    %17 = vector.extract_strided_slice %12 {offsets = [0, 121], sizes = [8, 7], strides = [1, 1]} : vector<8x128xbf16> to vector<8x7xbf16>
    %18 = vector.extract_strided_slice %12 {offsets = [0, 0], sizes = [8, 121], strides = [1, 1]} : vector<8x128xbf16> to vector<8x121xbf16>
    %19 = tpu.concatenate %17, %18 in 1 : vector<8x7xbf16>, vector<8x121xbf16> -> vector<8x128xbf16>
    %20 = vector.extract_strided_slice %12 {offsets = [0, 122], sizes = [8, 6], strides = [1, 1]} : vector<8x128xbf16> to vector<8x6xbf16>
    %21 = vector.extract_strided_slice %12 {offsets = [0, 0], sizes = [8, 122], strides = [1, 1]} : vector<8x128xbf16> to vector<8x122xbf16>
    %22 = tpu.concatenate %20, %21 in 1 : vector<8x6xbf16>, vector<8x122xbf16> -> vector<8x128xbf16>
    %23 = vector.extract_strided_slice %12 {offsets = [0, 123], sizes = [8, 5], strides = [1, 1]} : vector<8x128xbf16> to vector<8x5xbf16>
    %24 = vector.extract_strided_slice %12 {offsets = [0, 0], sizes = [8, 123], strides = [1, 1]} : vector<8x128xbf16> to vector<8x123xbf16>
    %25 = tpu.concatenate %23, %24 in 1 : vector<8x5xbf16>, vector<8x123xbf16> -> vector<8x128xbf16>
    %26 = vector.extract_strided_slice %12 {offsets = [0, 124], sizes = [8, 4], strides = [1, 1]} : vector<8x128xbf16> to vector<8x4xbf16>
    %27 = vector.extract_strided_slice %12 {offsets = [0, 0], sizes = [8, 124], strides = [1, 1]} : vector<8x128xbf16> to vector<8x124xbf16>
    %28 = tpu.concatenate %26, %27 in 1 : vector<8x4xbf16>, vector<8x124xbf16> -> vector<8x128xbf16>
    %29 = vector.extract_strided_slice %12 {offsets = [0, 125], sizes = [8, 3], strides = [1, 1]} : vector<8x128xbf16> to vector<8x3xbf16>
    %30 = vector.extract_strided_slice %12 {offsets = [0, 0], sizes = [8, 125], strides = [1, 1]} : vector<8x128xbf16> to vector<8x125xbf16>
    %31 = tpu.concatenate %29, %30 in 1 : vector<8x3xbf16>, vector<8x125xbf16> -> vector<8x128xbf16>
    %32 = vector.extract_strided_slice %12 {offsets = [0, 126], sizes = [8, 2], strides = [1, 1]} : vector<8x128xbf16> to vector<8x2xbf16>
    %33 = vector.extract_strided_slice %12 {offsets = [0, 0], sizes = [8, 126], strides = [1, 1]} : vector<8x128xbf16> to vector<8x126xbf16>
    %34 = tpu.concatenate %32, %33 in 1 : vector<8x2xbf16>, vector<8x126xbf16> -> vector<8x128xbf16>
    %35 = vector.extract_strided_slice %12 {offsets = [0, 127], sizes = [8, 1], strides = [1, 1]} : vector<8x128xbf16> to vector<8x1xbf16>
    %36 = vector.extract_strided_slice %12 {offsets = [0, 0], sizes = [8, 127], strides = [1, 1]} : vector<8x128xbf16> to vector<8x127xbf16>
    %37 = tpu.concatenate %35, %36 in 1 : vector<8x1xbf16>, vector<8x127xbf16> -> vector<8x128xbf16>
    %38 = vector.extract_strided_slice %12 {offsets = [0, 1], sizes = [8, 127], strides = [1, 1]} : vector<8x128xbf16> to vector<8x127xbf16>
    %39 = vector.extract_strided_slice %12 {offsets = [0, 0], sizes = [8, 1], strides = [1, 1]} : vector<8x128xbf16> to vector<8x1xbf16>
    %40 = tpu.concatenate %38, %39 in 1 : vector<8x127xbf16>, vector<8x1xbf16> -> vector<8x128xbf16>
    %41 = vector.extract_strided_slice %12 {offsets = [0, 2], sizes = [8, 126], strides = [1, 1]} : vector<8x128xbf16> to vector<8x126xbf16>
    %42 = vector.extract_strided_slice %12 {offsets = [0, 0], sizes = [8, 2], strides = [1, 1]} : vector<8x128xbf16> to vector<8x2xbf16>
    %43 = tpu.concatenate %41, %42 in 1 : vector<8x126xbf16>, vector<8x2xbf16> -> vector<8x128xbf16>
    %44 = vector.extract_strided_slice %12 {offsets = [0, 3], sizes = [8, 125], strides = [1, 1]} : vector<8x128xbf16> to vector<8x125xbf16>
    %45 = vector.extract_strided_slice %12 {offsets = [0, 0], sizes = [8, 3], strides = [1, 1]} : vector<8x128xbf16> to vector<8x3xbf16>
    %46 = tpu.concatenate %44, %45 in 1 : vector<8x125xbf16>, vector<8x3xbf16> -> vector<8x128xbf16>
    %47 = vector.extract_strided_slice %12 {offsets = [0, 4], sizes = [8, 124], strides = [1, 1]} : vector<8x128xbf16> to vector<8x124xbf16>
    %48 = vector.extract_strided_slice %12 {offsets = [0, 0], sizes = [8, 4], strides = [1, 1]} : vector<8x128xbf16> to vector<8x4xbf16>
    %49 = tpu.concatenate %47, %48 in 1 : vector<8x124xbf16>, vector<8x4xbf16> -> vector<8x128xbf16>
    %50 = vector.extract_strided_slice %12 {offsets = [0, 5], sizes = [8, 123], strides = [1, 1]} : vector<8x128xbf16> to vector<8x123xbf16>
    %51 = vector.extract_strided_slice %12 {offsets = [0, 0], sizes = [8, 5], strides = [1, 1]} : vector<8x128xbf16> to vector<8x5xbf16>
    %52 = tpu.concatenate %50, %51 in 1 : vector<8x123xbf16>, vector<8x5xbf16> -> vector<8x128xbf16>
    %53 = vector.extract_strided_slice %12 {offsets = [0, 6], sizes = [8, 122], strides = [1, 1]} : vector<8x128xbf16> to vector<8x122xbf16>
    %54 = vector.extract_strided_slice %12 {offsets = [0, 0], sizes = [8, 6], strides = [1, 1]} : vector<8x128xbf16> to vector<8x6xbf16>
    %55 = tpu.concatenate %53, %54 in 1 : vector<8x122xbf16>, vector<8x6xbf16> -> vector<8x128xbf16>
    %56 = vector.extract_strided_slice %12 {offsets = [0, 7], sizes = [8, 121], strides = [1, 1]} : vector<8x128xbf16> to vector<8x121xbf16>
    %57 = vector.extract_strided_slice %12 {offsets = [0, 0], sizes = [8, 7], strides = [1, 1]} : vector<8x128xbf16> to vector<8x7xbf16>
    %58 = tpu.concatenate %56, %57 in 1 : vector<8x121xbf16>, vector<8x7xbf16> -> vector<8x128xbf16>
    %59 = vector.extract_strided_slice %12 {offsets = [0, 8], sizes = [8, 120], strides = [1, 1]} : vector<8x128xbf16> to vector<8x120xbf16>
    %60 = vector.extract_strided_slice %12 {offsets = [0, 0], sizes = [8, 8], strides = [1, 1]} : vector<8x128xbf16> to vector<8x8xbf16>
    %61 = tpu.concatenate %59, %60 in 1 : vector<8x120xbf16>, vector<8x8xbf16> -> vector<8x128xbf16>
    %62 = tpu.concatenate %16, %19, %22, %25, %28, %31, %34, %37, %12, %40, %43, %46, %49, %52, %55, %58 in 0 : vector<8x128xbf16>, vector<8x128xbf16>, vector<8x128xbf16>, vector<8x128xbf16>, vector<8x128xbf16>, vector<8x128xbf16>, vector<8x128xbf16>, vector<8x128xbf16>, vector<8x128xbf16>, vector<8x128xbf16>, vector<8x128xbf16>, vector<8x128xbf16>, vector<8x128xbf16>, vector<8x128xbf16>, vector<8x128xbf16>, vector<8x128xbf16> -> vector<128x128xbf16>
    %63 = tpu.concatenate %62, %61 in 0 : vector<128x128xbf16>, vector<8x128xbf16> -> vector<136x128xbf16>
    %cst_9 = arith.constant dense<0.000000e+00> : vector<8x128xf32>
    %64 = tpu.matmul %13, %63, %cst_9 {dimension_numbers = #tpu.dot_dimension_numbers<[1], [0], [0], [1], [0, 0, 1, 1], [], []>} : vector<8x136xbf16>, vector<136x128xbf16>, vector<8x128xf32> -> vector<8x128xf32>
    %c0_10 = arith.constant 0 : index
    %c0_11 = arith.constant 0 : index
    %65 = vector.load %arg6[%c0_10, %c0_11] : memref<8x1xf32, #tpu.memory_space<vmem>>, vector<8x1xf32>
    %66 = vector.broadcast %65 : vector<8x1xf32> to vector<8x128xf32>
    %67 = arith.mulf %64, %66 : vector<8x128xf32>
    %c0_12 = arith.constant 0 : index
    %c0_13 = arith.constant 0 : index
    %68 = vector.load %arg7[%c0_12, %c0_13] : memref<8x1xf32, #tpu.memory_space<vmem>>, vector<8x1xf32>
    %69 = vector.broadcast %68 : vector<8x1xf32> to vector<8x128xf32>
    %70 = arith.addf %67, %69 : vector<8x128xf32>
    %cst_14 = arith.constant 0.000000e+00 : f32
    %71 = vector.broadcast %cst_14 : f32 to vector<8x128xf32>
    %72 = arith.maximumf %70, %71 : vector<8x128xf32>
    %73 = vector.broadcast %1 : vector<1x128xf32> to vector<8x128xf32>
    %74 = arith.mulf %72, %73 : vector<8x128xf32>
    %75 = arith.truncf %74 : vector<8x128xf32> to vector<8x128xbf16>
    %c0_15 = arith.constant 0 : index
    %c0_16 = arith.constant 0 : index
    %76 = vector.load %arg8[%c0_15, %c0_16] : memref<8x136xbf16, #tpu.memory_space<vmem>>, vector<8x136xbf16>
    %77 = vector.extract_strided_slice %75 {offsets = [0, 120], sizes = [8, 8], strides = [1, 1]} : vector<8x128xbf16> to vector<8x8xbf16>
    %78 = vector.extract_strided_slice %75 {offsets = [0, 0], sizes = [8, 120], strides = [1, 1]} : vector<8x128xbf16> to vector<8x120xbf16>
    %79 = tpu.concatenate %77, %78 in 1 : vector<8x8xbf16>, vector<8x120xbf16> -> vector<8x128xbf16>
    %80 = vector.extract_strided_slice %75 {offsets = [0, 121], sizes = [8, 7], strides = [1, 1]} : vector<8x128xbf16> to vector<8x7xbf16>
    %81 = vector.extract_strided_slice %75 {offsets = [0, 0], sizes = [8, 121], strides = [1, 1]} : vector<8x128xbf16> to vector<8x121xbf16>
    %82 = tpu.concatenate %80, %81 in 1 : vector<8x7xbf16>, vector<8x121xbf16> -> vector<8x128xbf16>
    %83 = vector.extract_strided_slice %75 {offsets = [0, 122], sizes = [8, 6], strides = [1, 1]} : vector<8x128xbf16> to vector<8x6xbf16>
    %84 = vector.extract_strided_slice %75 {offsets = [0, 0], sizes = [8, 122], strides = [1, 1]} : vector<8x128xbf16> to vector<8x122xbf16>
    %85 = tpu.concatenate %83, %84 in 1 : vector<8x6xbf16>, vector<8x122xbf16> -> vector<8x128xbf16>
    %86 = vector.extract_strided_slice %75 {offsets = [0, 123], sizes = [8, 5], strides = [1, 1]} : vector<8x128xbf16> to vector<8x5xbf16>
    %87 = vector.extract_strided_slice %75 {offsets = [0, 0], sizes = [8, 123], strides = [1, 1]} : vector<8x128xbf16> to vector<8x123xbf16>
    %88 = tpu.concatenate %86, %87 in 1 : vector<8x5xbf16>, vector<8x123xbf16> -> vector<8x128xbf16>
    %89 = vector.extract_strided_slice %75 {offsets = [0, 124], sizes = [8, 4], strides = [1, 1]} : vector<8x128xbf16> to vector<8x4xbf16>
    %90 = vector.extract_strided_slice %75 {offsets = [0, 0], sizes = [8, 124], strides = [1, 1]} : vector<8x128xbf16> to vector<8x124xbf16>
    %91 = tpu.concatenate %89, %90 in 1 : vector<8x4xbf16>, vector<8x124xbf16> -> vector<8x128xbf16>
    %92 = vector.extract_strided_slice %75 {offsets = [0, 125], sizes = [8, 3], strides = [1, 1]} : vector<8x128xbf16> to vector<8x3xbf16>
    %93 = vector.extract_strided_slice %75 {offsets = [0, 0], sizes = [8, 125], strides = [1, 1]} : vector<8x128xbf16> to vector<8x125xbf16>
    %94 = tpu.concatenate %92, %93 in 1 : vector<8x3xbf16>, vector<8x125xbf16> -> vector<8x128xbf16>
    %95 = vector.extract_strided_slice %75 {offsets = [0, 126], sizes = [8, 2], strides = [1, 1]} : vector<8x128xbf16> to vector<8x2xbf16>
    %96 = vector.extract_strided_slice %75 {offsets = [0, 0], sizes = [8, 126], strides = [1, 1]} : vector<8x128xbf16> to vector<8x126xbf16>
    %97 = tpu.concatenate %95, %96 in 1 : vector<8x2xbf16>, vector<8x126xbf16> -> vector<8x128xbf16>
    %98 = vector.extract_strided_slice %75 {offsets = [0, 127], sizes = [8, 1], strides = [1, 1]} : vector<8x128xbf16> to vector<8x1xbf16>
    %99 = vector.extract_strided_slice %75 {offsets = [0, 0], sizes = [8, 127], strides = [1, 1]} : vector<8x128xbf16> to vector<8x127xbf16>
    %100 = tpu.concatenate %98, %99 in 1 : vector<8x1xbf16>, vector<8x127xbf16> -> vector<8x128xbf16>
    %101 = vector.extract_strided_slice %75 {offsets = [0, 1], sizes = [8, 127], strides = [1, 1]} : vector<8x128xbf16> to vector<8x127xbf16>
    %102 = vector.extract_strided_slice %75 {offsets = [0, 0], sizes = [8, 1], strides = [1, 1]} : vector<8x128xbf16> to vector<8x1xbf16>
    %103 = tpu.concatenate %101, %102 in 1 : vector<8x127xbf16>, vector<8x1xbf16> -> vector<8x128xbf16>
    %104 = vector.extract_strided_slice %75 {offsets = [0, 2], sizes = [8, 126], strides = [1, 1]} : vector<8x128xbf16> to vector<8x126xbf16>
    %105 = vector.extract_strided_slice %75 {offsets = [0, 0], sizes = [8, 2], strides = [1, 1]} : vector<8x128xbf16> to vector<8x2xbf16>
    %106 = tpu.concatenate %104, %105 in 1 : vector<8x126xbf16>, vector<8x2xbf16> -> vector<8x128xbf16>
    %107 = vector.extract_strided_slice %75 {offsets = [0, 3], sizes = [8, 125], strides = [1, 1]} : vector<8x128xbf16> to vector<8x125xbf16>
    %108 = vector.extract_strided_slice %75 {offsets = [0, 0], sizes = [8, 3], strides = [1, 1]} : vector<8x128xbf16> to vector<8x3xbf16>
    %109 = tpu.concatenate %107, %108 in 1 : vector<8x125xbf16>, vector<8x3xbf16> -> vector<8x128xbf16>
    %110 = vector.extract_strided_slice %75 {offsets = [0, 4], sizes = [8, 124], strides = [1, 1]} : vector<8x128xbf16> to vector<8x124xbf16>
    %111 = vector.extract_strided_slice %75 {offsets = [0, 0], sizes = [8, 4], strides = [1, 1]} : vector<8x128xbf16> to vector<8x4xbf16>
    %112 = tpu.concatenate %110, %111 in 1 : vector<8x124xbf16>, vector<8x4xbf16> -> vector<8x128xbf16>
    %113 = vector.extract_strided_slice %75 {offsets = [0, 5], sizes = [8, 123], strides = [1, 1]} : vector<8x128xbf16> to vector<8x123xbf16>
    %114 = vector.extract_strided_slice %75 {offsets = [0, 0], sizes = [8, 5], strides = [1, 1]} : vector<8x128xbf16> to vector<8x5xbf16>
    %115 = tpu.concatenate %113, %114 in 1 : vector<8x123xbf16>, vector<8x5xbf16> -> vector<8x128xbf16>
    %116 = vector.extract_strided_slice %75 {offsets = [0, 6], sizes = [8, 122], strides = [1, 1]} : vector<8x128xbf16> to vector<8x122xbf16>
    %117 = vector.extract_strided_slice %75 {offsets = [0, 0], sizes = [8, 6], strides = [1, 1]} : vector<8x128xbf16> to vector<8x6xbf16>
    %118 = tpu.concatenate %116, %117 in 1 : vector<8x122xbf16>, vector<8x6xbf16> -> vector<8x128xbf16>
    %119 = vector.extract_strided_slice %75 {offsets = [0, 7], sizes = [8, 121], strides = [1, 1]} : vector<8x128xbf16> to vector<8x121xbf16>
    %120 = vector.extract_strided_slice %75 {offsets = [0, 0], sizes = [8, 7], strides = [1, 1]} : vector<8x128xbf16> to vector<8x7xbf16>
    %121 = tpu.concatenate %119, %120 in 1 : vector<8x121xbf16>, vector<8x7xbf16> -> vector<8x128xbf16>
    %122 = vector.extract_strided_slice %75 {offsets = [0, 8], sizes = [8, 120], strides = [1, 1]} : vector<8x128xbf16> to vector<8x120xbf16>
    %123 = vector.extract_strided_slice %75 {offsets = [0, 0], sizes = [8, 8], strides = [1, 1]} : vector<8x128xbf16> to vector<8x8xbf16>
    %124 = tpu.concatenate %122, %123 in 1 : vector<8x120xbf16>, vector<8x8xbf16> -> vector<8x128xbf16>
    %125 = tpu.concatenate %79, %82, %85, %88, %91, %94, %97, %100, %75, %103, %106, %109, %112, %115, %118, %121 in 0 : vector<8x128xbf16>, vector<8x128xbf16>, vector<8x128xbf16>, vector<8x128xbf16>, vector<8x128xbf16>, vector<8x128xbf16>, vector<8x128xbf16>, vector<8x128xbf16>, vector<8x128xbf16>, vector<8x128xbf16>, vector<8x128xbf16>, vector<8x128xbf16>, vector<8x128xbf16>, vector<8x128xbf16>, vector<8x128xbf16>, vector<8x128xbf16> -> vector<128x128xbf16>
    %126 = tpu.concatenate %125, %124 in 0 : vector<128x128xbf16>, vector<8x128xbf16> -> vector<136x128xbf16>
    %cst_17 = arith.constant dense<0.000000e+00> : vector<8x128xf32>
    %127 = tpu.matmul %76, %126, %cst_17 {dimension_numbers = #tpu.dot_dimension_numbers<[1], [0], [0], [1], [0, 0, 1, 1], [], []>} : vector<8x136xbf16>, vector<136x128xbf16>, vector<8x128xf32> -> vector<8x128xf32>
    %128 = arith.addf %127, %0 : vector<8x128xf32>
    %c0_18 = arith.constant 0 : index
    %c0_19 = arith.constant 0 : index
    %129 = vector.load %arg9[%c0_18, %c0_19] : memref<8x128xf32, #tpu.memory_space<vmem>>, vector<8x128xf32>
    tpu.vector_store %arg9[%c0_18, %c0_19], %128 {strides = array<i32>} : memref<8x128xf32, #tpu.memory_space<vmem>>, vector<8x128xf32>,
    return
  }
  func.func @transform_0(%arg0: i32) -> (i32, i32) {
    %c0_i32 = arith.constant 0 : i32
    %c0_i32_0 = arith.constant 0 : i32
    return %c0_i32, %arg0 : i32, i32
  }
  func.func @transform_1(%arg0: i32) -> (i32, i32) {
    %c0_i32 = arith.constant 0 : i32
    %c0_i32_0 = arith.constant 0 : i32
    return %c0_i32, %arg0 : i32, i32
  }
  func.func @transform_2(%arg0: i32) -> (i32, i32) {
    %c0_i32 = arith.constant 0 : i32
    %c0_i32_0 = arith.constant 0 : i32
    %c0_i32_1 = arith.constant 0 : i32
    return %c0_i32, %c0_i32_0 : i32, i32
  }
  func.func @transform_3(%arg0: i32) -> (i32, i32) {
    %c0_i32 = arith.constant 0 : i32
    %c0_i32_0 = arith.constant 0 : i32
    %c0_i32_1 = arith.constant 0 : i32
    return %c0_i32, %c0_i32_0 : i32, i32
  }
  func.func @transform_4(%arg0: i32) -> (i32, i32) {
    %c0_i32 = arith.constant 0 : i32
    %c0_i32_0 = arith.constant 0 : i32
    %c0_i32_1 = arith.constant 0 : i32
    return %c0_i32, %c0_i32_0 : i32, i32
  }
  func.func @transform_5(%arg0: i32) -> (i32, i32) {
    %c0_i32 = arith.constant 0 : i32
    %c0_i32_0 = arith.constant 0 : i32
    %c0_i32_1 = arith.constant 0 : i32
    return %c0_i32, %c0_i32_0 : i32, i32
  }
  func.func @transform_6(%arg0: i32) -> (i32, i32) {
    %c0_i32 = arith.constant 0 : i32
    %c0_i32_0 = arith.constant 0 : i32
    %c0_i32_1 = arith.constant 0 : i32
    return %c0_i32, %c0_i32_0 : i32, i32
  }
  func.func @transform_7(%arg0: i32) -> (i32, i32) {
    %c0_i32 = arith.constant 0 : i32
    %c0_i32_0 = arith.constant 0 : i32
    %c0_i32_1 = arith.constant 0 : i32
    return %c0_i32, %c0_i32_0 : i32, i32
  }
  func.func @transform_8(%arg0: i32) -> (i32, i32) {
    %c0_i32 = arith.constant 0 : i32
    %c0_i32_0 = arith.constant 0 : i32
    return %c0_i32, %arg0 : i32, i32
  }
}

</mosaic_0001>

<llo_original>
// kernel: tpu_custom_call.1
$region0: #{tpu_custom_call.1}
  #allocation0 [shape = 'u32[]', space=smem, size = 0x4, offset = 0x4, fixed_abs, tag = 'smem constant byte address 0x4 - core index']
  #allocation1 [shape = 'u32[144,128]{1,0:T(1,128)}', space=vmem, size = 0x12000, scoped, tag = 'internal scratch']
  %s0 = inlined_call_operand.vmem [shape: f32[8,256], index: 0, kind: input, shape index: {}]
  %s1 = inlined_call_operand.vmem [shape: f32[1,256], index: 1, kind: input, shape index: {}]
  %s2 = inlined_call_operand.vmem [shape: f32[8,1], index: 2, kind: input, shape index: {}]
  %s3 = inlined_call_operand.vmem [shape: f32[8,1], index: 3, kind: input, shape index: {}]
  %s4 = inlined_call_operand.vmem [shape: bf16[8,136], index: 4, kind: input, shape index: {}]
  %s5 = inlined_call_operand.vmem [shape: f32[8,1], index: 5, kind: input, shape index: {}]
  %s6 = inlined_call_operand.vmem [shape: f32[8,1], index: 6, kind: input, shape index: {}]
  %s7 = inlined_call_operand.vmem [shape: bf16[8,136], index: 7, kind: input, shape index: {}]
  %s8 = inlined_call_operand.hbm [shape: f32[8,256], index: 8, kind: output, shape index: {}]
  %s9 = sld [smem:[#allocation0]]
  $region65: #{tpu_custom_call.1} parent=0
    _
  %s11 = ssub.s32 1, %s9
  %s12 = scalar_select 0, %s11, %s9
  $region1: #{tpu_custom_call.1} parent=0
    #allocation2 [shape = 'u8[8192]{0}', space=vmem, size = 0x2000, scoped, tag = 'output window, operand 0']
    #allocation3 [shape = 's32[2]{0}', space=sflag, size = 0x8, scoped, tag = 'scoped memory for tpu_custom_call.1']
    %13 = vsyncpa [#allocation3], 0
    %s14 = scalar_lea.sflag [#allocation3], 1
    %15 = vsyncpa %s14, 0
    loop: start=0, step=1, limit=4
    $region2: #{tpu_custom_call.1} parent=1 // loop_pre_header
      _
    $region3: #{tpu_custom_call.1} parent=1 // loop_header
      %s17 = sphi 0, %s21
      %p18 = scmp.ge.s32.totalorder %s17, 4
      %s27 = sphi 0, %s29
      %s30 = sphi 0, %s27
      %s31 = sphi 0, %s30
      %s47 = sphi 0, %s31
      %s53 = sphi 0, %s55
      %s56 = sphi 0, %s53
      %s57 = sphi 0, %s56
      %s73 = sphi 0, %s57
      %s77 = sphi 0, %s77
      %s79 = sphi 0, %s77
      %s80 = sphi 0, %s79
      %s94 = sphi 0, %s80
      %s98 = sphi 0, %s98
      %s100 = sphi 0, %s98
      %s101 = sphi 0, %s100
      %s115 = sphi 0, %s101
      %s119 = sphi 0, %s119
      %s121 = sphi 0, %s119
      %s122 = sphi 0, %s121
      %s136 = sphi 0, %s122
      %s140 = sphi 0, %s140
      %s142 = sphi 0, %s140
      %s143 = sphi 0, %s142
      %s157 = sphi 0, %s143
      %s161 = sphi 0, %s161
      %s163 = sphi 0, %s161
      %s164 = sphi 0, %s163
      %s178 = sphi 0, %s164
      %s182 = sphi 0, %s182
      %s184 = sphi 0, %s182
      %s185 = sphi 0, %s184
      %s199 = sphi 0, %s185
      %s205 = sphi 0, %s207
      %s208 = sphi 0, %s205
      %s209 = sphi 0, %s208
      %s225 = sphi 0, %s209
    $region4: #{tpu_custom_call.1} parent=1 // loop_header_branch
      %20 = sbr.rel (%p18) target = $region8
    $region5: #{tpu_custom_call.1} parent=1 // loop_body
      %s22 = ssub.s32 %s17, 1
      %s23 = ssub.s32 %s17, 2
      %s24 = sadd.s32 %s17, 1
      %s25 = ssub.s32 %s17, %s24
      %p26 = scmp.eq.s32.totalorder %s25, 0
      %s28 = sadd.s32 %s27, 1
      %s29 = scalar_select %p26, %s27, %s28
      %p32 = pneg %p26
      %p33 = scmp.eq.s32.totalorder %s17, 1
      %p34 = por %p32, %p33
      %p35 = scmp.ne.s32.totalorder %s27, %s30
      %p36 = scmp.eq.s32.totalorder %s17, 0
      %p37 = por %p35, %p36
      %p38 = scmp.ne.s32.totalorder %s27, %s30
      %p39 = scmp.eq.s32.totalorder %s22, 1
      %p40 = por %p38, %p39
      %p41 = scmp.ne.s32.totalorder %s30, %s31
      %p42 = scmp.eq.s32.totalorder %s22, 0
      %p43 = por %p41, %p42
      %p44 = scmp.ne.s32.totalorder %s30, %s31
      %p45 = scmp.eq.s32.totalorder %s23, 1
      %p46 = por %p44, %p45
      %p48 = scmp.ne.s32.totalorder %s31, %s47
      %p49 = scmp.eq.s32.totalorder %s23, 0
      %p50 = por %p48, %p49
      %s51 = ssub.s32 %s17, %s24
      %p52 = scmp.eq.s32.totalorder %s51, 0
      %s54 = sadd.s32 %s53, 1
      %s55 = scalar_select %p52, %s53, %s54
      %p58 = pneg %p52
      %p59 = scmp.eq.s32.totalorder %s17, 1
      %p60 = por %p58, %p59
      %p61 = scmp.ne.s32.totalorder %s53, %s56
      %p62 = scmp.eq.s32.totalorder %s17, 0
      %p63 = por %p61, %p62
      %p64 = scmp.ne.s32.totalorder %s53, %s56
      %p65 = scmp.eq.s32.totalorder %s22, 1
      %p66 = por %p64, %p65
      %p67 = scmp.ne.s32.totalorder %s56, %s57
      %p68 = scmp.eq.s32.totalorder %s22, 0
      %p69 = por %p67, %p68
      %p70 = scmp.ne.s32.totalorder %s56, %s57
      %p71 = scmp.eq.s32.totalorder %s23, 1
      %p72 = por %p70, %p71
      %p74 = scmp.ne.s32.totalorder %s57, %s73
      %p75 = scmp.eq.s32.totalorder %s23, 0
      %p76 = por %p74, %p75
      %s78 = sadd.s32 %s77, 1
      %p81 = scmp.eq.s32.totalorder %s17, 1
      %p82 = scmp.ne.s32.totalorder %s77, %s79
      %p83 = scmp.eq.s32.totalorder %s17, 0
      %p84 = por %p82, %p83
      %p85 = scmp.ne.s32.totalorder %s77, %s79
      %p86 = scmp.eq.s32.totalorder %s22, 1
      %p87 = por %p85, %p86
      %p88 = scmp.ne.s32.totalorder %s79, %s80
      %p89 = scmp.eq.s32.totalorder %s22, 0
      %p90 = por %p88, %p89
      %p91 = scmp.ne.s32.totalorder %s79, %s80
      %p92 = scmp.eq.s32.totalorder %s23, 1
      %p93 = por %p91, %p92
      %p95 = scmp.ne.s32.totalorder %s80, %s94
      %p96 = scmp.eq.s32.totalorder %s23, 0
      %p97 = por %p95, %p96
      %s99 = sadd.s32 %s98, 1
      %p102 = scmp.eq.s32.totalorder %s17, 1
      %p103 = scmp.ne.s32.totalorder %s98, %s100
      %p104 = scmp.eq.s32.totalorder %s17, 0
      %p105 = por %p103, %p104
      %p106 = scmp.ne.s32.totalorder %s98, %s100
      %p107 = scmp.eq.s32.totalorder %s22, 1
      %p108 = por %p106, %p107
      %p109 = scmp.ne.s32.totalorder %s100, %s101
      %p110 = scmp.eq.s32.totalorder %s22, 0
      %p111 = por %p109, %p110
      %p112 = scmp.ne.s32.totalorder %s100, %s101
      %p113 = scmp.eq.s32.totalorder %s23, 1
      %p114 = por %p112, %p113
      %p116 = scmp.ne.s32.totalorder %s101, %s115
      %p117 = scmp.eq.s32.totalorder %s23, 0
      %p118 = por %p116, %p117
      %s120 = sadd.s32 %s119, 1
      %p123 = scmp.eq.s32.totalorder %s17, 1
      %p124 = scmp.ne.s32.totalorder %s119, %s121
      %p125 = scmp.eq.s32.totalorder %s17, 0
      %p126 = por %p124, %p125
      %p127 = scmp.ne.s32.totalorder %s119, %s121
      %p128 = scmp.eq.s32.totalorder %s22, 1
      %p129 = por %p127, %p128
      %p130 = scmp.ne.s32.totalorder %s121, %s122
      %p131 = scmp.eq.s32.totalorder %s22, 0
      %p132 = por %p130, %p131
      %p133 = scmp.ne.s32.totalorder %s121, %s122
      %p134 = scmp.eq.s32.totalorder %s23, 1
      %p135 = por %p133, %p134
      %p137 = scmp.ne.s32.totalorder %s122, %s136
      %p138 = scmp.eq.s32.totalorder %s23, 0
      %p139 = por %p137, %p138
      %s141 = sadd.s32 %s140, 1
      %p144 = scmp.eq.s32.totalorder %s17, 1
      %p145 = scmp.ne.s32.totalorder %s140, %s142
      %p146 = scmp.eq.s32.totalorder %s17, 0
      %p147 = por %p145, %p146
      %p148 = scmp.ne.s32.totalorder %s140, %s142
      %p149 = scmp.eq.s32.totalorder %s22, 1
      %p150 = por %p148, %p149
      %p151 = scmp.ne.s32.totalorder %s142, %s143
      %p152 = scmp.eq.s32.totalorder %s22, 0
      %p153 = por %p151, %p152
      %p154 = scmp.ne.s32.totalorder %s142, %s143
      %p155 = scmp.eq.s32.totalorder %s23, 1
      %p156 = por %p154, %p155
      %p158 = scmp.ne.s32.totalorder %s143, %s157
      %p159 = scmp.eq.s32.totalorder %s23, 0
      %p160 = por %p158, %p159
      %s162 = sadd.s32 %s161, 1
      %p165 = scmp.eq.s32.totalorder %s17, 1
      %p166 = scmp.ne.s32.totalorder %s161, %s163
      %p167 = scmp.eq.s32.totalorder %s17, 0
      %p168 = por %p166, %p167
      %p169 = scmp.ne.s32.totalorder %s161, %s163
      %p170 = scmp.eq.s32.totalorder %s22, 1
      %p171 = por %p169, %p170
      %p172 = scmp.ne.s32.totalorder %s163, %s164
      %p173 = scmp.eq.s32.totalorder %s22, 0
      %p174 = por %p172, %p173
      %p175 = scmp.ne.s32.totalorder %s163, %s164
      %p176 = scmp.eq.s32.totalorder %s23, 1
      %p177 = por %p175, %p176
      %p179 = scmp.ne.s32.totalorder %s164, %s178
      %p180 = scmp.eq.s32.totalorder %s23, 0
      %p181 = por %p179, %p180
      %s183 = sadd.s32 %s182, 1
      %p186 = scmp.eq.s32.totalorder %s17, 1
      %p187 = scmp.ne.s32.totalorder %s182, %s184
      %p188 = scmp.eq.s32.totalorder %s17, 0
      %p189 = por %p187, %p188
      %p190 = scmp.ne.s32.totalorder %s182, %s184
      %p191 = scmp.eq.s32.totalorder %s22, 1
      %p192 = por %p190, %p191
      %p193 = scmp.ne.s32.totalorder %s184, %s185
      %p194 = scmp.eq.s32.totalorder %s22, 0
      %p195 = por %p193, %p194
      %p196 = scmp.ne.s32.totalorder %s184, %s185
      %p197 = scmp.eq.s32.totalorder %s23, 1
      %p198 = por %p196, %p197
      %p200 = scmp.ne.s32.totalorder %s185, %s199
      %p201 = scmp.eq.s32.totalorder %s23, 0
      %p202 = por %p200, %p201
      %s203 = ssub.s32 %s17, %s24
      %p204 = scmp.eq.s32.totalorder %s203, 0
      %s206 = sadd.s32 %s205, 1
      %s207 = scalar_select %p204, %s205, %s206
      %p210 = pneg %p204
      %p211 = scmp.eq.s32.totalorder %s17, 1
      %p212 = por %p210, %p211
      %p213 = scmp.ne.s32.totalorder %s205, %s208
      %p214 = scmp.eq.s32.totalorder %s17, 0
      %p215 = por %p213, %p214
      %p216 = scmp.ne.s32.totalorder %s205, %s208
      %p217 = scmp.eq.s32.totalorder %s22, 1
      %p218 = por %p216, %p217
      %p219 = scmp.ne.s32.totalorder %s208, %s209
      %p220 = scmp.eq.s32.totalorder %s22, 0
      %p221 = por %p219, %p220
      %p222 = scmp.ne.s32.totalorder %s208, %s209
      %p223 = scmp.eq.s32.totalorder %s23, 1
      %p224 = por %p222, %p223
      %p226 = scmp.ne.s32.totalorder %s209, %s225
      %p227 = scmp.eq.s32.totalorder %s23, 0
      %p228 = por %p226, %p227
      %p229 = scmp.le.s32.totalorder 1, %s17
      %p230 = scmp.lt.s32.totalorder %s17, 3
      %p231 = pnand %p229, %p230
      %p232 = pneg %p231
      // Predicated region
      $region9: #{tpu_custom_call.1} parent=5 // pred_check
        _
      $region10: #{tpu_custom_call.1} parent=5 // pred_check_branch
        %234 = sbr.rel (%p231) target = $region12
      $region11: #{tpu_custom_call.1} parent=5 // pred_region
        %s235 = ssub.s32 %s17, 1
        // Predicated region
        $region13: #{tpu_custom_call.1} parent=11 // pred_check
          %p236 = pneg %p90
        $region14: #{tpu_custom_call.1} parent=11 // pred_check_branch
          %238 = sbr.rel (%p236) target = $region16
        $region15: #{tpu_custom_call.1} parent=11 // pred_region
          _
        $region16: #{tpu_custom_call.1} parent=11 // pred_fallthru
          _
        // Predicated region
        $region17: #{tpu_custom_call.1} parent=11 // pred_check
          %p239 = pneg %p111
        $region18: #{tpu_custom_call.1} parent=11 // pred_check_branch
          %241 = sbr.rel (%p239) target = $region20
        $region19: #{tpu_custom_call.1} parent=11 // pred_region
          _
        $region20: #{tpu_custom_call.1} parent=11 // pred_fallthru
          _
        // Predicated region
        $region21: #{tpu_custom_call.1} parent=11 // pred_check
          %p242 = pneg %p132
        $region22: #{tpu_custom_call.1} parent=11 // pred_check_branch
          %244 = sbr.rel (%p242) target = $region24
        $region23: #{tpu_custom_call.1} parent=11 // pred_region
          _
        $region24: #{tpu_custom_call.1} parent=11 // pred_fallthru
          _
        // Predicated region
        $region25: #{tpu_custom_call.1} parent=11 // pred_check
          %p245 = pneg %p153
        $region26: #{tpu_custom_call.1} parent=11 // pred_check_branch
          %247 = sbr.rel (%p245) target = $region28
        $region27: #{tpu_custom_call.1} parent=11 // pred_region
          _
        $region28: #{tpu_custom_call.1} parent=11 // pred_fallthru
          _
        // Predicated region
        $region29: #{tpu_custom_call.1} parent=11 // pred_check
          %p248 = pneg %p174
        $region30: #{tpu_custom_call.1} parent=11 // pred_check_branch
          %250 = sbr.rel (%p248) target = $region32
        $region31: #{tpu_custom_call.1} parent=11 // pred_region
          _
        $region32: #{tpu_custom_call.1} parent=11 // pred_fallthru
          _
        // Predicated region
        $region33: #{tpu_custom_call.1} parent=11 // pred_check
          %p251 = pneg %p195
        $region34: #{tpu_custom_call.1} parent=11 // pred_check_branch
          %253 = sbr.rel (%p251) target = $region36
        $region35: #{tpu_custom_call.1} parent=11 // pred_region
          _
        $region36: #{tpu_custom_call.1} parent=11 // pred_fallthru
          _
      $region12: #{tpu_custom_call.1} parent=5 // pred_fallthru
        _
      %p254 = scmp.lt.s32.totalorder %s17, 2
      // Predicated region
      $region37: #{tpu_custom_call.1} parent=5 // pred_check
        %p255 = pneg %p254
      $region38: #{tpu_custom_call.1} parent=5 // pred_check_branch
        %257 = sbr.rel (%p255) target = $region40
      $region39: #{tpu_custom_call.1} parent=5 // pred_region
        // Predicated region
        $region41: #{tpu_custom_call.1} parent=39 // pred_check
          %p258 = pneg %p37
        $region42: #{tpu_custom_call.1} parent=39 // pred_check_branch
          %260 = sbr.rel (%p258) target = $region44
        $region43: #{tpu_custom_call.1} parent=39 // pred_region
          %p261 = scmp.lt.s32.totalorder %s17, 1
          %s262 = scalar_select %p261, %s17, 1
          %s263 = smul.addr %s262, 8
          %s264 = scalar_lea.vmem %s0, %s263
        $region44: #{tpu_custom_call.1} parent=39 // pred_fallthru
          _
        // Predicated region
        $region45: #{tpu_custom_call.1} parent=39 // pred_check
          %p265 = pneg %p63
        $region46: #{tpu_custom_call.1} parent=39 // pred_check_branch
          %267 = sbr.rel (%p265) target = $region48
        $region47: #{tpu_custom_call.1} parent=39 // pred_region
          %p268 = scmp.lt.s32.totalorder %s17, 1
          %s269 = scalar_select %p268, %s17, 1
          %s270 = scalar_lea.vmem %s1, %s269
        $region48: #{tpu_custom_call.1} parent=39 // pred_fallthru
          _
      $region40: #{tpu_custom_call.1} parent=5 // pred_fallthru
        _
      %p271 = scmp.le.s32.totalorder 1, %s17
      %p272 = scmp.lt.s32.totalorder %s17, 3
      %p273 = pnand %p271, %p272
      %p274 = pneg %p273
      // Predicated region
      $region49: #{tpu_custom_call.1} parent=5 // pred_check
        _
      $region50: #{tpu_custom_call.1} parent=5 // pred_check_branch
        %276 = sbr.rel (%p273) target = $region52
      $region51: #{tpu_custom_call.1} parent=5 // pred_region
        %s277 = ssub.s32 %s17, 1
        %p278 = scmp.lt.s32.totalorder %s22, 1
        %s279 = scalar_select %p278, %s22, 1
        %s280 = smul.addr %s279, 8
        %s281 = scalar_lea.vmem %s0, %s280
        %p282 = pneg %p43
        %p283 = pneg %p40
        %p284 = scmp.lt.s32.totalorder %s22, 1
        %s285 = scalar_select %p284, %s22, 1
        %s286 = scalar_lea.vmem %s1, %s285
        %p287 = pneg %p69
        %p288 = pneg %p66
        %p289 = pneg %p90
        %p290 = pneg %p87
        %p291 = pneg %p111
        %p292 = pneg %p108
        %p293 = pneg %p132
        %p294 = pneg %p129
        %p295 = pneg %p153
        %p296 = pneg %p150
        %p297 = pneg %p174
        %p298 = pneg %p171
        %p299 = pneg %p195
        %p300 = pneg %p192
        %p301 = pneg %p221
        %p302 = pneg %p218
        %s303 = sand.u32 %s208, 1
        %s304 = scalar_lea.sflag [#allocation3], %s303
        %s305 = sand.u32 %s208, 1
        %s306 = smul.addr %s305, 8
        %s307 = scalar_lea.vmem [#allocation2], %s306
        %p308 = scmp.lt.s32.totalorder %s22, 1
        %s309 = scalar_select %p308, %s22, 1
        %s310 = smul.addr %s309, 8
        %s311 = scalar_lea.vmem %s0, %s310
        %p312 = scmp.lt.s32.totalorder %s22, 1
        %s313 = scalar_select %p312, %s22, 1
        %s314 = scalar_lea.vmem %s1, %s313
        %v316 = vld [vmem:[%s311] sm:$0xff]
        %v317 = vld [vmem:[%s314] sm:$0x1]
        %v318 = vld [vmem:[%s2] sm:$0xff]
        %320 = vset.pattern.permute.xlu0 0
        %321 = vperm.xlu0 %320, %v318
        %v322 = vpop.permute.xlu0 %321
        %v324 = vmul.f32 %v316, %v322
        %v325 = vld [vmem:[%s3] sm:$0xff]
        %327 = vset.pattern.permute.xlu0 0
        %328 = vperm.xlu0 %327, %v325
        %v329 = vpop.permute.xlu0 %328
        %v331 = vadd.f32 %v324, %v329
        %v332 = vmax.f32 %v331, 0.0
        %v334 = vlaneseq
        %v335 = vshrl.u32 %v334, 7
        %v336 = vsub.s32 0, %v335
        %v337 = vrot.slane %v317, %v336
        %v339 = vmul.f32 %v332, %v337
        %v340 = vpack.c.bf16 %v339, %v339
        %v341 = vld [vmem:[%s4] sm:$0xff]
        %343 = vrot.lane.b32.xlu0 %v340, 8
        %v344 = vpop.permute.xlu0 %343
        %vm345 = vcmask 64512
        %347 = vrot.lane.b32.xlu0 %v340, 7
        %v348 = vpop.permute.xlu0 %347
        %350 = vrot.lane.b32.xlu0 %v340, 6
        %v351 = vpop.permute.xlu0 %350
        %353 = vrot.lane.b32.xlu0 %v340, 5
        %v354 = vpop.permute.xlu0 %353
        %356 = vrot.lane.b32.xlu0 %v340, 4
        %v357 = vpop.permute.xlu0 %356
        %359 = vrot.lane.b32.xlu0 %v340, 3
        %v360 = vpop.permute.xlu0 %359
        %362 = vrot.lane.b32.xlu0 %v340, 2
        %v363 = vpop.permute.xlu0 %362
        %365 = vrot.lane.b32.xlu0 %v340, 1
        %v366 = vpop.permute.xlu0 %365
        %368 = vrot.lane.b32.xlu0 %v340, 127
        %v369 = vpop.permute.xlu0 %368
        %371 = vrot.lane.b32.xlu0 %v340, 126
        %v372 = vpop.permute.xlu0 %371
        %374 = vrot.lane.b32.xlu0 %v340, 125
        %v375 = vpop.permute.xlu0 %374
        %377 = vrot.lane.b32.xlu0 %v340, 124
        %v378 = vpop.permute.xlu0 %377
        %380 = vrot.lane.b32.xlu0 %v340, 123
        %v381 = vpop.permute.xlu0 %380
        %383 = vrot.lane.b32.xlu0 %v340, 122
        %v384 = vpop.permute.xlu0 %383
        %386 = vrot.lane.b32.xlu0 %v340, 121
        %v387 = vpop.permute.xlu0 %386
        %389 = vrot.lane.b32.xlu0 %v340, 120
        %v390 = vpop.permute.xlu0 %389
        %v393 = vrot.slane %v348, 4
        %v395 = vrot.slane %v354, 4
        %v397 = vrot.slane %v360, 4
        %v399 = vrot.slane %v366, 4
        %v401 = vrot.slane %v369, 4
        %v403 = vrot.slane %v375, 4
        %v405 = vrot.slane %v381, 4
        %v407 = vrot.slane %v387, 4
        %vm408 = vcmask 1043456
        %v410 = vsel %vm408, %v344, %v393
        %v413 = vsel %vm408, %v351, %v395
        %v416 = vsel %vm408, %v357, %v397
        %v419 = vsel %vm408, %v363, %v399
        %v423 = vsel %vm408, %v340, %v401
        %v426 = vsel %vm408, %v372, %v403
        %v429 = vsel %vm408, %v378, %v405
        %v432 = vsel %vm408, %v384, %v407
        %v435 = vunpack.c.l.b16 %v341
        %v436 = vunpack.c.h.b16 %v341
        %v437 = vpack.c.b16 %v435, %v435
        %v438 = vpack.c.b16 %v436, %v436
        %v441 = vsel %vm345, %v438, 0
        %v443 = vsel %vm408, %v390, 0
        %445 = vmatprep.subr.bf16.mxu0 0
        %446 = vmatpush1.bf16.msra.mxu0 %v432
        %447 = vmatprep.subr.bf16.mxu0 0
        %448 = vmatpush1.bf16.msra.mxu0 %v429
        %449 = vmatprep.subr.bf16.mxu0 0
        %450 = vmatpush1.bf16.msra.mxu0 %v426
        %451 = vmatprep.subr.bf16.mxu0 0
        %452 = vmatpush1.bf16.msra.mxu0 %v423
        %453 = vmatprep.subr.bf16.mxu0 0
        %454 = vmatpush1.bf16.msra.mxu0 %v419
        %455 = vmatprep.subr.bf16.mxu0 0
        %456 = vmatpush1.bf16.msra.mxu0 %v416
        %457 = vmatprep.subr.bf16.mxu0 0
        %458 = vmatpush1.bf16.msra.mxu0 %v413
        %459 = vmatprep.subr.bf16.mxu0 0
        %460 = vmatpush1.bf16.msra.mxu0 %v410
        %461 = vmatprep.subr.bf16.mxu0 0
        %462 = vmatpush2.bf16.msra.mxu0 0
        %463 = vmatprep.subr.bf16.mxu0 0
        %464 = vmatpush2.bf16.msra.mxu0 0
        %465 = vmatprep.subr.bf16.mxu0 0
        %466 = vmatpush2.bf16.msra.mxu0 0
        %467 = vmatprep.subr.bf16.mxu0 0
        %468 = vmatpush2.bf16.msra.mxu0 0
        %469 = vmatprep.subr.bf16.mxu0 0
        %470 = vmatpush2.bf16.msra.mxu0 0
        %471 = vmatprep.subr.bf16.mxu0 0
        %472 = vmatpush2.bf16.msra.mxu0 0
        %473 = vmatprep.subr.bf16.mxu0 0
        %474 = vmatpush2.bf16.msra.mxu0 0
        %475 = vmatprep.subr.bf16.mxu0 0
        %476 = vmatpush2.bf16.msra.mxu0 %v443
        %477 = vmatprep.mubr.bf16.mxu0 %v441
        %478 = vmatmul.mubr.bf16.gmra.mxu0 %v437
        %v479 = vpop.f32.mrf.mxu0
        %v480 = vadd.f32 0.0, %v479
        %v481 = vpop.f32.mrf.mxu0
        %v482 = vpop.f32.mrf.mxu0
        %v483 = vpop.f32.mrf.mxu0
        %484 = vdwg.mxu0
        %v485 = vld [vmem:[%s5] sm:$0xff]
        %487 = vset.pattern.permute.xlu0 0
        %488 = vperm.xlu0 %487, %v485
        %v489 = vpop.permute.xlu0 %488
        %v491 = vmul.f32 %v480, %v489
        %v492 = vld [vmem:[%s6] sm:$0xff]
        %494 = vset.pattern.permute.xlu0 0
        %495 = vperm.xlu0 %494, %v492
        %v496 = vpop.permute.xlu0 %495
        %v498 = vadd.f32 %v491, %v496
        %v499 = vmax.f32 %v498, 0.0
        %v500 = vmul.f32 %v499, %v337
        %v501 = vpack.c.bf16 %v500, %v500
        %v502 = vld [vmem:[%s7] sm:$0xff]
        %504 = vrot.lane.b32.xlu0 %v501, 8
        %v505 = vpop.permute.xlu0 %504
        %507 = vrot.lane.b32.xlu0 %v501, 7
        %v508 = vpop.permute.xlu0 %507
        %510 = vrot.lane.b32.xlu0 %v501, 6
        %v511 = vpop.permute.xlu0 %510
        %513 = vrot.lane.b32.xlu0 %v501, 5
        %v514 = vpop.permute.xlu0 %513
        %516 = vrot.lane.b32.xlu0 %v501, 4
        %v517 = vpop.permute.xlu0 %516
        %519 = vrot.lane.b32.xlu0 %v501, 3
        %v520 = vpop.permute.xlu0 %519
        %522 = vrot.lane.b32.xlu0 %v501, 2
        %v523 = vpop.permute.xlu0 %522
        %525 = vrot.lane.b32.xlu0 %v501, 1
        %v526 = vpop.permute.xlu0 %525
        %528 = vrot.lane.b32.xlu0 %v501, 127
        %v529 = vpop.permute.xlu0 %528
        %531 = vrot.lane.b32.xlu0 %v501, 126
        %v532 = vpop.permute.xlu0 %531
        %534 = vrot.lane.b32.xlu0 %v501, 125
        %v535 = vpop.permute.xlu0 %534
        %537 = vrot.lane.b32.xlu0 %v501, 124
        %v538 = vpop.permute.xlu0 %537
        %540 = vrot.lane.b32.xlu0 %v501, 123
        %v541 = vpop.permute.xlu0 %540
        %543 = vrot.lane.b32.xlu0 %v501, 122
        %v544 = vpop.permute.xlu0 %543
        %546 = vrot.lane.b32.xlu0 %v501, 121
        %v547 = vpop.permute.xlu0 %546
        %549 = vrot.lane.b32.xlu0 %v501, 120
        %v550 = vpop.permute.xlu0 %549
        %v553 = vrot.slane %v508, 4
        %v555 = vrot.slane %v514, 4
        %v557 = vrot.slane %v520, 4
        %v559 = vrot.slane %v526, 4
        %v561 = vrot.slane %v529, 4
        %v563 = vrot.slane %v535, 4
        %v565 = vrot.slane %v541, 4
        %v567 = vrot.slane %v547, 4
        %v569 = vsel %vm408, %v505, %v553
        %v572 = vsel %vm408, %v511, %v555
        %v575 = vsel %vm408, %v517, %v557
        %v578 = vsel %vm408, %v523, %v559
        %v582 = vsel %vm408, %v501, %v561
        %v585 = vsel %vm408, %v532, %v563
        %v588 = vsel %vm408, %v538, %v565
        %v591 = vsel %vm408, %v544, %v567
        %v594 = vunpack.c.l.b16 %v502
        %v595 = vunpack.c.h.b16 %v502
        %v596 = vpack.c.b16 %v594, %v594
        %v597 = vpack.c.b16 %v595, %v595
        %v600 = vsel %vm345, %v597, 0
        %v602 = vsel %vm408, %v550, 0
        %604 = vmatprep.subr.bf16.mxu0 0
        %605 = vmatpush1.bf16.msra.mxu0 %v591
        %606 = vmatprep.subr.bf16.mxu0 0
        %607 = vmatpush1.bf16.msra.mxu0 %v588
        %608 = vmatprep.subr.bf16.mxu0 0
        %609 = vmatpush1.bf16.msra.mxu0 %v585
        %610 = vmatprep.subr.bf16.mxu0 0
        %611 = vmatpush1.bf16.msra.mxu0 %v582
        %612 = vmatprep.subr.bf16.mxu0 0
        %613 = vmatpush1.bf16.msra.mxu0 %v578
        %614 = vmatprep.subr.bf16.mxu0 0
        %615 = vmatpush1.bf16.msra.mxu0 %v575
        %616 = vmatprep.subr.bf16.mxu0 0
        %617 = vmatpush1.bf16.msra.mxu0 %v572
        %618 = vmatprep.subr.bf16.mxu0 0
        %619 = vmatpush1.bf16.msra.mxu0 %v569
        %620 = vmatprep.subr.bf16.mxu0 0
        %621 = vmatpush2.bf16.msra.mxu0 0
        %622 = vmatprep.subr.bf16.mxu0 0
        %623 = vmatpush2.bf16.msra.mxu0 0
        %624 = vmatprep.subr.bf16.mxu0 0
        %625 = vmatpush2.bf16.msra.mxu0 0
        %626 = vmatprep.subr.bf16.mxu0 0
        %627 = vmatpush2.bf16.msra.mxu0 0
        %628 = vmatprep.subr.bf16.mxu0 0
        %629 = vmatpush2.bf16.msra.mxu0 0
        %630 = vmatprep.subr.bf16.mxu0 0
        %631 = vmatpush2.bf16.msra.mxu0 0
        %632 = vmatprep.subr.bf16.mxu0 0
        %633 = vmatpush2.bf16.msra.mxu0 0
        %634 = vmatprep.subr.bf16.mxu0 0
        %635 = vmatpush2.bf16.msra.mxu0 %v602
        %636 = vmatprep.mubr.bf16.mxu0 %v600
        %637 = vmatmul.mubr.bf16.gmra.mxu0 %v596
        %v638 = vpop.f32.mrf.mxu0
        %v639 = vadd.f32 %v316, %v638
        %v640 = vpop.f32.mrf.mxu0
        %v641 = vpop.f32.mrf.mxu0
        %v642 = vpop.f32.mrf.mxu0
        %643 = vdwg.mxu0
        %644 = vst [vmem:[%s307] sm:$0xff] %v639
        %s645 = sand.u32 %s208, 1
        %s646 = scalar_lea.sflag [#allocation3], %s645
        %s647 = sand.u32 %s208, 1
        %s648 = smul.addr %s647, 8
        %s649 = scalar_lea.vmem [#allocation2], %s648
        // Predicated region
        $region53: #{tpu_custom_call.1} parent=51 // pred_check
          %p650 = pneg %p218
        $region54: #{tpu_custom_call.1} parent=51 // pred_check_branch
          %652 = sbr.rel (%p650) target = $region56
        $region55: #{tpu_custom_call.1} parent=51 // pred_region
          %s654 = ssub.s32 128, 128
          %655 = vsyncadd %s646, %s654
          %s656 = smul.addr %s22, 128
          %s657 = scalar_lea.hbm %s8, %s656
          %s659 = sshll.u32 %s649, 4
          %s660 = int_to_ptr.vmem [resolvable:$true] %s659
          %662 = dma.vmem_to_hbm [thread:$0]  %s660, 128, %s657, %s646
        $region56: #{tpu_custom_call.1} parent=51 // pred_fallthru
          _
      $region52: #{tpu_custom_call.1} parent=5 // pred_fallthru
        _
      %p663 = scmp.le.s32.totalorder 2, %s17
      // Predicated region
      $region57: #{tpu_custom_call.1} parent=5 // pred_check
        %p664 = pneg %p663
      $region58: #{tpu_custom_call.1} parent=5 // pred_check_branch
        %666 = sbr.rel (%p664) target = $region60
      $region59: #{tpu_custom_call.1} parent=5 // pred_region
        %s667 = ssub.s32 %s17, 2
        // Predicated region
        $region61: #{tpu_custom_call.1} parent=59 // pred_check
          %p668 = pneg %p224
        $region62: #{tpu_custom_call.1} parent=59 // pred_check_branch
          %670 = sbr.rel (%p668) target = $region64
        $region63: #{tpu_custom_call.1} parent=59 // pred_region
          %s671 = sand.u32 %s209, 1
          %s672 = scalar_lea.sflag [#allocation3], %s671
          %s673 = sand.u32 %s209, 1
          %s674 = smul.addr %s673, 8
          %s675 = scalar_lea.vmem [#allocation2], %s674
          %676 = dma.done %s672, 128
        $region64: #{tpu_custom_call.1} parent=59 // pred_fallthru
          _
      $region60: #{tpu_custom_call.1} parent=5 // pred_fallthru
        _
    $region6: #{tpu_custom_call.1} parent=1 // loop_footer
      %s21 = sadd.s32 1, %s17
    $region7: #{tpu_custom_call.1} parent=1 // loop_footer_branch
      %16 = sbr.rel target = $region3
    $region8: #{tpu_custom_call.1} parent=1 // loop_exit
      _
    %677 = vsyncpa [#allocation3], 1
    %s678 = scalar_lea.sflag [#allocation3], 1
    %679 = vsyncpa %s678, 1

</llo_original>
